<compile_context>
chip_gen: v7x
topology: tpu7x:2x2x1
jax: 0.10.0
libtpu: 0.0.40
codegen_flags: <defaults>
</compile_context>

<pallas_src>
from typing import NamedTuple, Optional

import jax
import jax.numpy as jnp
from jax.experimental import pallas as pl
from jax.experimental.pallas import tpu as pltpu


# ----------------------------------------------------------------------------
# Small helpers
# ----------------------------------------------------------------------------
def _round_up(x, m):
    return (x + m - 1) // m * m


def _cdiv(a, b):
    return -(-a // b)


def _vmem_plan():
    """Generation-aware VMEM sizing: (physical_cap, live-buffer budget, scoped limit)."""
    try:
        cap = int(getattr(pltpu.get_tpu_info(), "vmem_capacity_bytes", 0)) or None
    except Exception:  # pragma: no cover - be robust if query is unavailable
        cap = None
    if not cap:
        cap = 64 * 1024 * 1024  # assume the smallest case (v7x: 64 MiB per TC)
    budget = min(cap // 2, 24 * 1024 * 1024)          # target for all live buffers
    vmem_limit = min(cap, budget + 8 * 1024 * 1024)   # explicit scoped-VMEM request
    return cap, budget, vmem_limit


def _max_b_tile():
    """256-row batch tiles on 256x256-MXU parts (v6e/v7x); 128 elsewhere (v5e/v4)."""
    try:
        kind = jax.devices()[0].device_kind.lower()
    except Exception:  # pragma: no cover
        return 128
    return 256 if ("v6" in kind or "v7" in kind) else 128


class _Plan(NamedTuple):
    steps: int            # original number of timesteps
    embed: int            # original embed_size
    steps_pad: int        # steps padded to the dtype sublane tile
    e_pad: int            # embed padded to num_slabs * e_tile
    e_tile: int           # balanced, 128-multiple E tile
    b_tile_max: int       # 128 or 256 depending on MXU width
    vmem_limit: int       # bytes passed to CompilerParams.vmem_limit_bytes
    use_pallas_table: bool


# ----------------------------------------------------------------------------
# One-time (init-time) table preparation — hoisted out of the per-call path.
# ----------------------------------------------------------------------------
def _prepare_weight(weight):
    steps, embed = weight.shape
    itemsize = jnp.dtype(weight.dtype).itemsize
    sublane = max(8, 32 // itemsize)          # 8 for f32, 16 for bf16, 32 for int8
    steps_pad = _round_up(steps, sublane)

    _, budget, vmem_limit = _vmem_plan()
    b_tile_max = _max_b_tile()

    # Bytes live alongside one weight slab of width E_TILE (conservatively assume
    # the slab is double-buffered even though we single-buffer big slabs):
    #   2 * weight slab            : 2 * steps_pad * E_TILE * itemsize
    #   2 * output tile            : 2 * b_tile * E_TILE * itemsize
    #   f32 one-hot temp + result  : b_tile * steps_pad * 4 + b_tile * E_TILE * 4
    fixed = b_tile_max * steps_pad * 4
    per_col = (2 * steps_pad + 2 * b_tile_max) * itemsize + 4 * b_tile_max
    e_tile_max = (budget - fixed) // per_col if budget > fixed else 0
    e_tile_max = (e_tile_max // 128) * 128

    if e_tile_max < 128:
        # Table too large to keep even a (steps_pad, 128) slab VMEM-resident.
        # TODO(synk): scalar-prefetch pl.Element row-gather path for huge tables.
        return weight, _Plan(steps, embed, steps_pad, embed, 0, b_tile_max,
                             vmem_limit, False)

    # Balanced E tiling: equal 128-multiple slabs instead of rounding E up to a
    # budget-derived tile (avoids DMA-ing large all-zero slabs).
    e_pad128 = _round_up(embed, 128)
    num_slabs = _cdiv(e_pad128, e_tile_max)
    e_tile = _round_up(_cdiv(e_pad128, num_slabs), 128)
    e_pad = e_tile * num_slabs

    w_pad = weight
    if (steps_pad, e_pad) != (steps, embed):
        # Happens ONCE here, not on every forward call.
        w_pad = jnp.pad(weight, ((0, steps_pad - steps), (0, e_pad - embed)))

    return w_pad, _Plan(steps, embed, steps_pad, e_pad, e_tile, b_tile_max,
                        vmem_limit, True)


# ----------------------------------------------------------------------------
# Kernel
# ----------------------------------------------------------------------------
def _onehot_gather_kernel(idx_ref, w_ref, out_ref):
    """out[b, :] = w[idx[b], :] via a one-hot matmul on the MXU.

    idx_ref: (B_TILE, 1) int32 timestep indices for this batch tile.
    w_ref:   (steps_pad, E_TILE) table slab; its block index is constant across
             the inner batch sweep, so it stays VMEM-resident.
    out_ref: (B_TILE, E_TILE) lane/sublane-dense output tile.
    """
    idx = idx_ref[...]                                       # (B_TILE, 1) int32
    b_tile = idx.shape[0]
    steps_pad = w_ref.shape[0]
    row_ids = jax.lax.broadcasted_iota(jnp.int32, (b_tile, steps_pad), 1)
    one_hot = (row_ids == idx).astype(w_ref.dtype)           # exact 0/1 values
    # HIGHEST keeps f32 table values un-rounded through the MXU passes so the
    # one-hot matmul reproduces jnp.take to f32 accuracy (not bf16 accuracy).
    precision = jax.lax.Precision.HIGHEST if w_ref.dtype == jnp.float32 else None
    out_ref[...] = jnp.dot(
        one_hot, w_ref[...],
        precision=precision,
        preferred_element_type=jnp.float32,
    ).astype(out_ref.dtype)


def _pallas_forward(idx, w_pad, plan: _Plan):
    B = idx.shape[0]
    steps_pad, e_pad = w_pad.shape
    e_tile = plan.e_tile
    itemsize = jnp.dtype(w_pad.dtype).itemsize

    b_tile = min(plan.b_tile_max, _round_up(B, 8))
    b_pad = _round_up(B, b_tile)
    if b_pad != B:
        idx = jnp.pad(idx, (0, b_pad - B))    # padded rows gather row 0; sliced off
    idx2d = idx.reshape(b_pad, 1)

    num_e = e_pad // e_tile
    num_b = b_pad // b_tile

    # Single-buffer the table slab once it is big enough for the saved VMEM to
    # matter: its block index only changes num_e times (revisited across the
    # whole inner batch sweep), so double-buffering buys nothing.
    slab_bytes = steps_pad * e_tile * itemsize
    w_spec_kwargs = {}
    if slab_bytes >= (2 << 20):
        w_spec_kwargs["pipeline_mode"] = pl.Buffered(1)
    w_spec = pl.BlockSpec((steps_pad, e_tile), lambda e, b: (0, e), **w_spec_kwargs)

    cost = pl.CostEstimate(
        flops=2 * b_pad * steps_pad * e_pad,
        transcendentals=0,
        bytes_accessed=(steps_pad * e_pad + b_pad * e_pad) * itemsize + b_pad * 4,
    )

    out = pl.pallas_call(
        _onehot_gather_kernel,
        out_shape=jax.ShapeDtypeStruct((b_pad, e_pad), w_pad.dtype),
        grid_spec=pltpu.PrefetchScalarGridSpec(
            num_scalar_prefetch=0,
            # E outer, batch inner: each weight E-slab is DMA'd once and reused
            # while all batch tiles are produced.
            grid=(num_e, num_b),
            in_specs=[
                pl.BlockSpec((b_tile, 1), lambda e, b: (b, 0)),   # indices
                w_spec,                                           # table slab
            ],
            out_specs=pl.BlockSpec((b_tile, e_tile), lambda e, b: (b, e)),
        ),
        compiler_params=pltpu.CompilerParams(
            # E axis "parallel": a v7x megacore split lands on E, so each core
            # streams only its share of the table (and holds half-size slabs).
            dimension_semantics=("parallel", "arbitrary"),
            vmem_limit_bytes=plan.vmem_limit,
        ),
        cost_estimate=cost,
    )(idx2d, w_pad)

    out = out[:B, :plan.embed]
    return out[:, None, :]                    # unsqueeze(1): metadata reshape


def _forward(x, w_pad, plan: _Plan, *, force_pallas=False):
    x = jnp.asarray(x)
    B = x.shape[0]
    # torch.nn.Embedding raises on out-of-range indices; we clamp instead.
    idx = jnp.clip(x.astype(jnp.int32), 0, plan.steps - 1)

    # When B < steps (the common diffusion case) the one-hot kernel would stream
    # the whole (steps x E) table through HBM for a B*E-byte answer -> gather.
    small = (B < plan.steps) or (B * plan.embed < 8 * 128)
    if (small and not force_pallas) or not plan.use_pallas_table:
        rows = jnp.take(w_pad, idx, axis=0)[:, : plan.embed]
        return rows[:, None, :]
    return _pallas_forward(idx, w_pad, plan)


# ----------------------------------------------------------------------------
# Module-style API (preferred: pads/tiles the table ONCE at init) + functional.
# ----------------------------------------------------------------------------
class TimestepEmbedding:
    """JAX/Pallas port of the PyTorch TimestepEmbedding module.

    Matches torch.nn.init.constant_(weight, 0) unless `weight` is supplied.
    """

    def __init__(self, steps, embed_size, *, weight=None, dtype=jnp.float32):
        if weight is None:
            weight = jnp.zeros((steps, embed_size), dtype)   # torch: constant_(0)
        assert weight.shape == (steps, embed_size)
        self.steps = steps
        self.embed_size = embed_size
        # One-time padding / tiling plan (hoisted out of the per-call path).
        self._w_pad, self._plan = _prepare_weight(weight)

    def __call__(self, x, *, force_pallas=False):
        return _forward(x, self._w_pad, self._plan, force_pallas=force_pallas)


def timestep_embedding(x, weight, *, force_pallas=False):
    """One-shot functional form.  For repeated calls prefer `TimestepEmbedding`
    (it pads/tiles the table once at init instead of on every forward)."""
    x = jnp.asarray(x)
    steps, embed = weight.shape
    B = x.shape[0]
    idx = jnp.clip(x.astype(jnp.int32), 0, steps - 1)
    if not force_pallas and ((B < steps) or (B * embed < 8 * 128)):
        return jnp.take(weight, idx, axis=0)[:, None, :]
    w_pad, plan = _prepare_weight(weight)
    return _forward(idx, w_pad, plan, force_pallas=force_pallas)


# ----------------------------------------------------------------------------
# Self-test
# ----------------------------------------------------------------------------
if __name__ == "__main__":
    key = jax.random.PRNGKey(0)
    k1, k2, k3 = jax.random.split(key, 3)

    # Case 1: module exactly as specified (zero-init table), tiny batch.
    steps, embed_size, batch = 16, 32, 2
    mod = TimestepEmbedding(steps, embed_size)
    x = jax.random.randint(k1, (batch,), 0, steps, dtype=jnp.int32)
    out1 = jax.block_until_ready(mod(x))
    assert out1.shape == (batch, 1, embed_size), out1.shape
    assert jnp.array_equal(out1, jnp.zeros_like(out1)), "case 1: zero-init mismatch"

    # Case 2: random table, forced Pallas path (E 32->128 pad, batch 2->8 pad).
    w = jax.random.normal(k2, (steps, embed_size), dtype=jnp.float32)
    mod2 = TimestepEmbedding(steps, embed_size, weight=w)
    out2 = jax.block_until_ready(mod2(x, force_pallas=True))
    ref2 = jnp.take(w, x, axis=0)[:, None, :]
    assert out2.shape == ref2.shape and out2.dtype == ref2.dtype
    assert jnp.allclose(out2, ref2, rtol=1e-5, atol=1e-5), "case 2: kernel mismatch"

    # Case 3: B >= steps so the default dispatch picks the Pallas kernel; most
    # batch elements share one timestep (common diffusion case), deduped free.
    steps3, embed3, batch3 = 8, 256, 32
    w3 = jax.random.normal(k3, (steps3, embed3), dtype=jnp.float32)
    mod3 = TimestepEmbedding(steps3, embed3, weight=w3)
    x3 = jnp.concatenate([jnp.full((batch3 - 4,), 5, dtype=jnp.int32),
                          jnp.arange(4, dtype=jnp.int32)])
    out3 = jax.block_until_ready(mod3(x3))
    ref3 = jnp.take(w3, x3, axis=0)[:, None, :]
    assert out3.shape == (batch3, 1, embed3), out3.shape
    assert jnp.allclose(out3, ref3, rtol=1e-5, atol=1e-5), "case 3: kernel mismatch"

    # Case 4: functional wrapper, small-B dispatch -> jnp.take fast path.
    out4 = jax.block_until_ready(timestep_embedding(x, w))
    assert jnp.array_equal(out4, ref2), "case 4: fast path mismatch"

    print("KERNEL_OK")
</pallas_src>

<mosaic_0001>
module attributes {stable_mosaic.version = 11 : i64} {
  func.func @_onehot_gather_kernel(%arg0: i32, %arg1: i32, %arg2: memref<8x1xi32, #tpu.memory_space<vmem>>, %arg3: memref<16x128xf32, #tpu.memory_space<vmem>>, %arg4: memref<8x128xf32, #tpu.memory_space<vmem>>) attributes {dimension_semantics = [#tpu.dimension_semantics<parallel>, #tpu.dimension_semantics<arbitrary>], iteration_bounds = array<i64: 1, 1>, scalar_prefetch = 0 : i64, scratch_operands = 0 : i64, tpu.core_type = #tpu.core_type<tc>, window_params = [{transform_indices = @transform_0, window_bounds = array<i64: 8, 1>}, {transform_indices = @transform_1, window_bounds = array<i64: 16, 128>}, {transform_indices = @transform_2, window_bounds = array<i64: 8, 128>}]} {
    %c0 = arith.constant 0 : index
    %c0_0 = arith.constant 0 : index
    %0 = vector.load %arg2[%c0, %c0_0] : memref<8x1xi32, #tpu.memory_space<vmem>>, vector<8x1xi32>
    %1 = tpu.iota {dimensions = array<i32: 1>} : vector<8x16xi32>
    %2 = vector.broadcast %0 : vector<8x1xi32> to vector<8x16xi32>
    %3 = arith.cmpi eq, %1, %2 : vector<8x16xi32>
    %4 = arith.extui %3 : vector<8x16xi1> to vector<8x16xi32>
    %5 = arith.sitofp %4 : vector<8x16xi32> to vector<8x16xf32>
    %c0_1 = arith.constant 0 : index
    %c0_2 = arith.constant 0 : index
    %6 = vector.load %arg3[%c0_1, %c0_2] : memref<16x128xf32, #tpu.memory_space<vmem>>, vector<16x128xf32>
    %cst = arith.constant dense<0.000000e+00> : vector<8x128xf32>
    %7 = tpu.matmul %5, %6, %cst {dimension_numbers = #tpu.dot_dimension_numbers<[1], [0], [0], [1], [0, 0, 1, 1], [], []>, precision = #tpu.contract_precision<fp32>} : vector<8x16xf32>, vector<16x128xf32>, vector<8x128xf32> -> vector<8x128xf32>
    %c0_3 = arith.constant 0 : index
    %c0_4 = arith.constant 0 : index
    %8 = vector.load %arg4[%c0_3, %c0_4] : memref<8x128xf32, #tpu.memory_space<vmem>>, vector<8x128xf32>
    tpu.vector_store %arg4[%c0_3, %c0_4], %7 {strides = array<i32>} : memref<8x128xf32, #tpu.memory_space<vmem>>, vector<8x128xf32>,
    return
  }
  func.func @transform_0(%arg0: i32, %arg1: i32) -> (i32, i32) {
    %c0_i32 = arith.constant 0 : i32
    %c0_i32_0 = arith.constant 0 : i32
    return %arg1, %c0_i32 : i32, i32
  }
  func.func @transform_1(%arg0: i32, %arg1: i32) -> (i32, i32) {
    %c0_i32 = arith.constant 0 : i32
    %c0_i32_0 = arith.constant 0 : i32
    return %c0_i32, %arg0 : i32, i32
  }
  func.func @transform_2(%arg0: i32, %arg1: i32) -> (i32, i32) {
    %c0_i32 = arith.constant 0 : i32
    return %arg1, %arg0 : i32, i32
  }
}

</mosaic_0001>

<llo_original>
// kernel: tpu_custom_call.1
$region0: #{tpu_custom_call.1}
  #allocation0 [shape = 'u32[]', space=smem, size = 0x4, offset = 0x4, fixed_abs, tag = 'smem constant byte address 0x4 - core index']
  #allocation1 [shape = 'u32[144,128]{1,0:T(1,128)}', space=vmem, size = 0x12000, scoped, tag = 'internal scratch']
  %s0 = inlined_call_operand.vmem [shape: s32[8,1], index: 0, kind: input, shape index: {}]
  %s1 = inlined_call_operand.hbm [shape: f32[16,128], index: 1, kind: input, shape index: {}]
  %s2 = inlined_call_operand.hbm [shape: f32[8,128], index: 2, kind: output, shape index: {}]
  %s3 = sld [smem:[#allocation0]]
  $region22: #{tpu_custom_call.1} parent=0
    _
  %s5 = ssub.s32 1, %s3
  %s6 = scalar_select 0, %s5, %s3
  $region1: #{tpu_custom_call.1} parent=0
    #allocation2 [shape = 'u8[8192]{0}', space=vmem, size = 0x2000, scoped, tag = 'input window, operand 1, single buffered']
    #allocation3 [shape = 's32[1]{0}', space=sflag, size = 0x4, scoped, tag = 'scoped memory for tpu_custom_call.1']
    #allocation4 [shape = 's32[1]{0}', space=sflag, size = 0x4, scoped, tag = 'scoped memory for tpu_custom_call.1']
    #allocation5 [shape = 'u8[4096]{0}', space=vmem, size = 0x1000, scoped, tag = 'output window, operand 0, single buffered']
    %7 = vsyncpa [#allocation3], 0
    %8 = vsyncpa [#allocation4], 0
    // Predicated region
    $region2: #{tpu_custom_call.1} parent=1 // pred_check
      _
    $region3: #{tpu_custom_call.1} parent=1 // pred_check_branch
      %10 = sbr.rel (0) target = $region5
    $region4: #{tpu_custom_call.1} parent=1 // pred_region
      _
    $region5: #{tpu_custom_call.1} parent=1 // pred_fallthru
      _
    // Predicated region
    $region6: #{tpu_custom_call.1} parent=1 // pred_check
      _
    $region7: #{tpu_custom_call.1} parent=1 // pred_check_branch
      %12 = sbr.rel (0) target = $region9
    $region8: #{tpu_custom_call.1} parent=1 // pred_region
      %s14 = ssub.s32 256, 256
      %15 = vsyncadd [#allocation3], %s14
      %s16 = sshll.u32 [#allocation2], 4
      %s17 = int_to_ptr.vmem [resolvable:$true] %s16
      %22 = dma.hbm_to_vmem [thread:$0]  %s1, 256, %s17, [#allocation3], 128, 128, 8
    $region9: #{tpu_custom_call.1} parent=1 // pred_fallthru
      _
    // Predicated region
    $region10: #{tpu_custom_call.1} parent=1 // pred_check
      _
    $region11: #{tpu_custom_call.1} parent=1 // pred_check_branch
      %24 = sbr.rel (0) target = $region13
    $region12: #{tpu_custom_call.1} parent=1 // pred_region
      %25 = dma.done [#allocation3], 256
    $region13: #{tpu_custom_call.1} parent=1 // pred_fallthru
      _
    %v26 = vld [vmem:[%s0] sm:$0xff]
    %v27 = vlaneseq
    %v28 = vand.u32 %v27, 127
    %29 = vset.pattern.permute.xlu0 0
    %30 = vperm.xlu0 %29, %v26
    %v31 = vpop.permute.xlu0 %30
    %vm32 = vcmp.eq.s32.totalorder %v28, %v31
    %v33 = vsel %vm32, 1, 0
    %v34 = vcvt.s32.f32 %v33
    %v35 = vld [vmem:[#allocation2] sm:$0xff]
    %v36 = vld [vmem:[#allocation2 + $0x8] sm:$0xff]
    %vm37 = vcmask 130048
    %v39 = vsel %vm37, %v34, 0
    %41 = vmatprep.subr.mxu0 0.0
    %v42 = vand.u32 %v35, 4294901760
    %43 = vmatpush1.msra.mxu0 %v42
    %44 = vmatprep.subr.mxu0 0.0
    %v45 = vand.u32 %v36, 4294901760
    %46 = vmatpush1.msra.mxu0 %v45
    %47 = vmatprep.subr.mxu0 0.0
    %48 = vmatpush1.msra.mxu0 0.0
    %49 = vmatprep.subr.mxu0 0.0
    %50 = vmatpush1.msra.mxu0 0.0
    %51 = vmatprep.subr.mxu0 0.0
    %52 = vmatpush1.msra.mxu0 0.0
    %53 = vmatprep.subr.mxu0 0.0
    %54 = vmatpush1.msra.mxu0 0.0
    %55 = vmatprep.subr.mxu0 0.0
    %56 = vmatpush1.msra.mxu0 0.0
    %57 = vmatprep.subr.mxu0 0.0
    %58 = vmatpush1.msra.mxu0 0.0
    %59 = vmatprep.subr.mxu0 0.0
    %60 = vmatpush1.msra.mxu0 0.0
    %61 = vmatprep.subr.mxu0 0.0
    %62 = vmatpush1.msra.mxu0 0.0
    %63 = vmatprep.subr.mxu0 0.0
    %64 = vmatpush1.msra.mxu0 0.0
    %65 = vmatprep.subr.mxu0 0.0
    %66 = vmatpush1.msra.mxu0 0.0
    %67 = vmatprep.subr.mxu0 0.0
    %68 = vmatpush1.msra.mxu0 0.0
    %69 = vmatprep.subr.mxu0 0.0
    %70 = vmatpush1.msra.mxu0 0.0
    %71 = vmatprep.subr.mxu0 0.0
    %72 = vmatpush1.msra.mxu0 0.0
    %73 = vmatprep.subr.mxu0 0.0
    %74 = vmatpush1.msra.mxu0 0.0
    %75 = vmatprep.subr.mxu0 0.0
    %76 = vmatpush1.msra.mxu0 0.0
    %77 = vmatprep.subr.mxu0 0.0
    %78 = vmatpush1.msra.mxu0 0.0
    %79 = vmatprep.subr.mxu0 0.0
    %80 = vmatpush1.msra.mxu0 0.0
    %81 = vmatprep.subr.mxu0 0.0
    %82 = vmatpush1.msra.mxu0 0.0
    %83 = vmatprep.subr.mxu0 0.0
    %84 = vmatpush1.msra.mxu0 0.0
    %85 = vmatprep.subr.mxu0 0.0
    %86 = vmatpush1.msra.mxu0 0.0
    %87 = vmatprep.subr.mxu0 0.0
    %88 = vmatpush1.msra.mxu0 0.0
    %89 = vmatprep.subr.mxu0 0.0
    %90 = vmatpush1.msra.mxu0 0.0
    %91 = vmatprep.subr.mxu0 0.0
    %92 = vmatpush1.msra.mxu0 0.0
    %93 = vmatprep.subr.mxu0 0.0
    %94 = vmatpush1.msra.mxu0 0.0
    %95 = vmatprep.subr.mxu0 0.0
    %96 = vmatpush1.msra.mxu0 0.0
    %97 = vmatprep.subr.mxu0 0.0
    %98 = vmatpush1.msra.mxu0 0.0
    %99 = vmatprep.subr.mxu0 0.0
    %100 = vmatpush1.msra.mxu0 0.0
    %101 = vmatprep.subr.mxu0 0.0
    %102 = vmatpush1.msra.mxu0 0.0
    %103 = vmatprep.subr.mxu0 0.0
    %104 = vmatpush1.msra.mxu0 0.0
    %105 = vmatprep.subr.mxu0 0.0
    %106 = vmatpush1.msra.mxu0 0.0
    %107 = vmatprep.mubr.f32.mxu0 0.0
    %v108 = vand.u32 %v39, 4294901760
    %v109 = vsub.f32 %v39, %v108
    %v110 = vand.u32 %v109, 4294901760
    %v111 = vsub.f32 %v109, %v110
    %v112 = vand.u32 %v111, 4294901760
    %113 = vmatmul.mubr.f32.gmra.mrb[0].mxu0 %v112
    %v114 = vpop.f32.mrb[0].mxu0
    %v115 = vadd.f32 0.0, %v114
    %v116 = vpop.f32.mrb[0].mxu0
    %117 = vdwg.mxu0
    %118 = vmatprep.subr.mxu0 0.0
    %v119 = vand.u32 %v35, 4294901760
    %v120 = vsub.f32 %v35, %v119
    %v121 = vand.u32 %v120, 4294901760
    %v122 = vsub.f32 %v120, %v121
    %v123 = vand.u32 %v122, 4294901760
    %124 = vmatpush1.msra.mxu0 %v123
    %125 = vmatprep.subr.mxu0 0.0
    %v126 = vand.u32 %v36, 4294901760
    %v127 = vsub.f32 %v36, %v126
    %v128 = vand.u32 %v127, 4294901760
    %v129 = vsub.f32 %v127, %v128
    %v130 = vand.u32 %v129, 4294901760
    %131 = vmatpush1.msra.mxu0 %v130
    %132 = vmatprep.subr.mxu0 0.0
    %133 = vmatpush1.msra.mxu0 0.0
    %134 = vmatprep.subr.mxu0 0.0
    %135 = vmatpush1.msra.mxu0 0.0
    %136 = vmatprep.subr.mxu0 0.0
    %137 = vmatpush1.msra.mxu0 0.0
    %138 = vmatprep.subr.mxu0 0.0
    %139 = vmatpush1.msra.mxu0 0.0
    %140 = vmatprep.subr.mxu0 0.0
    %141 = vmatpush1.msra.mxu0 0.0
    %142 = vmatprep.subr.mxu0 0.0
    %143 = vmatpush1.msra.mxu0 0.0
    %144 = vmatprep.subr.mxu0 0.0
    %145 = vmatpush1.msra.mxu0 0.0
    %146 = vmatprep.subr.mxu0 0.0
    %147 = vmatpush1.msra.mxu0 0.0
    %148 = vmatprep.subr.mxu0 0.0
    %149 = vmatpush1.msra.mxu0 0.0
    %150 = vmatprep.subr.mxu0 0.0
    %151 = vmatpush1.msra.mxu0 0.0
    %152 = vmatprep.subr.mxu0 0.0
    %153 = vmatpush1.msra.mxu0 0.0
    %154 = vmatprep.subr.mxu0 0.0
    %155 = vmatpush1.msra.mxu0 0.0
    %156 = vmatprep.subr.mxu0 0.0
    %157 = vmatpush1.msra.mxu0 0.0
    %158 = vmatprep.subr.mxu0 0.0
    %159 = vmatpush1.msra.mxu0 0.0
    %160 = vmatprep.subr.mxu0 0.0
    %161 = vmatpush1.msra.mxu0 0.0
    %162 = vmatprep.subr.mxu0 0.0
    %163 = vmatpush1.msra.mxu0 0.0
    %164 = vmatprep.subr.mxu0 0.0
    %165 = vmatpush1.msra.mxu0 0.0
    %166 = vmatprep.subr.mxu0 0.0
    %167 = vmatpush1.msra.mxu0 0.0
    %168 = vmatprep.subr.mxu0 0.0
    %169 = vmatpush1.msra.mxu0 0.0
    %170 = vmatprep.subr.mxu0 0.0
    %171 = vmatpush1.msra.mxu0 0.0
    %172 = vmatprep.subr.mxu0 0.0
    %173 = vmatpush1.msra.mxu0 0.0
    %174 = vmatprep.subr.mxu0 0.0
    %175 = vmatpush1.msra.mxu0 0.0
    %176 = vmatprep.subr.mxu0 0.0
    %177 = vmatpush1.msra.mxu0 0.0
    %178 = vmatprep.subr.mxu0 0.0
    %179 = vmatpush1.msra.mxu0 0.0
    %180 = vmatprep.subr.mxu0 0.0
    %181 = vmatpush1.msra.mxu0 0.0
    %182 = vmatprep.subr.mxu0 0.0
    %183 = vmatpush1.msra.mxu0 0.0
    %184 = vmatprep.subr.mxu0 0.0
    %185 = vmatpush1.msra.mxu0 0.0
    %186 = vmatprep.subr.mxu0 0.0
    %187 = vmatpush1.msra.mxu0 0.0
    %188 = vmatprep.subr.mxu0 0.0
    %189 = vmatpush1.msra.mxu0 0.0
    %190 = vmatprep.subr.mxu0 0.0
    %191 = vmatpush1.msra.mxu0 0.0
    %192 = vmatprep.mubr.f32.mxu0 0.0
    %v193 = vand.u32 %v39, 4294901760
    %194 = vmatmul.mubr.f32.gmra.mrb[0].mxu0 %v193
    %v195 = vpop.f32.mrb[0].mxu0
    %v196 = vadd.f32 %v115, %v195
    %v197 = vpop.f32.mrb[0].mxu0
    %198 = vdwg.mxu0
    %199 = vmatprep.subr.mxu0 0.0
    %v200 = vand.u32 %v35, 4294901760
    %v201 = vsub.f32 %v35, %v200
    %202 = vmatpush1.msra.mxu0 %v201
    %203 = vmatprep.subr.mxu0 0.0
    %v204 = vand.u32 %v36, 4294901760
    %v205 = vsub.f32 %v36, %v204
    %206 = vmatpush1.msra.mxu0 %v205
    %207 = vmatprep.subr.mxu0 0.0
    %208 = vmatpush1.msra.mxu0 0.0
    %209 = vmatprep.subr.mxu0 0.0
    %210 = vmatpush1.msra.mxu0 0.0
    %211 = vmatprep.subr.mxu0 0.0
    %212 = vmatpush1.msra.mxu0 0.0
    %213 = vmatprep.subr.mxu0 0.0
    %214 = vmatpush1.msra.mxu0 0.0
    %215 = vmatprep.subr.mxu0 0.0
    %216 = vmatpush1.msra.mxu0 0.0
    %217 = vmatprep.subr.mxu0 0.0
    %218 = vmatpush1.msra.mxu0 0.0
    %219 = vmatprep.subr.mxu0 0.0
    %220 = vmatpush1.msra.mxu0 0.0
    %221 = vmatprep.subr.mxu0 0.0
    %222 = vmatpush1.msra.mxu0 0.0
    %223 = vmatprep.subr.mxu0 0.0
    %224 = vmatpush1.msra.mxu0 0.0
    %225 = vmatprep.subr.mxu0 0.0
    %226 = vmatpush1.msra.mxu0 0.0
    %227 = vmatprep.subr.mxu0 0.0
    %228 = vmatpush1.msra.mxu0 0.0
    %229 = vmatprep.subr.mxu0 0.0
    %230 = vmatpush1.msra.mxu0 0.0
    %231 = vmatprep.subr.mxu0 0.0
    %232 = vmatpush1.msra.mxu0 0.0
    %233 = vmatprep.subr.mxu0 0.0
    %234 = vmatpush1.msra.mxu0 0.0
    %235 = vmatprep.subr.mxu0 0.0
    %236 = vmatpush1.msra.mxu0 0.0
    %237 = vmatprep.subr.mxu0 0.0
    %238 = vmatpush1.msra.mxu0 0.0
    %239 = vmatprep.subr.mxu0 0.0
    %240 = vmatpush1.msra.mxu0 0.0
    %241 = vmatprep.subr.mxu0 0.0
    %242 = vmatpush1.msra.mxu0 0.0
    %243 = vmatprep.subr.mxu0 0.0
    %244 = vmatpush1.msra.mxu0 0.0
    %245 = vmatprep.subr.mxu0 0.0
    %246 = vmatpush1.msra.mxu0 0.0
    %247 = vmatprep.subr.mxu0 0.0
    %248 = vmatpush1.msra.mxu0 0.0
    %249 = vmatprep.subr.mxu0 0.0
    %250 = vmatpush1.msra.mxu0 0.0
    %251 = vmatprep.subr.mxu0 0.0
    %252 = vmatpush1.msra.mxu0 0.0
    %253 = vmatprep.subr.mxu0 0.0
    %254 = vmatpush1.msra.mxu0 0.0
    %255 = vmatprep.subr.mxu0 0.0
    %256 = vmatpush1.msra.mxu0 0.0
    %257 = vmatprep.subr.mxu0 0.0
    %258 = vmatpush1.msra.mxu0 0.0
    %259 = vmatprep.subr.mxu0 0.0
    %260 = vmatpush1.msra.mxu0 0.0
    %261 = vmatprep.subr.mxu0 0.0
    %262 = vmatpush1.msra.mxu0 0.0
    %263 = vmatprep.subr.mxu0 0.0
    %264 = vmatpush1.msra.mxu0 0.0
    %265 = vmatprep.subr.mxu0 0.0
    %266 = vmatpush1.msra.mxu0 0.0
    %267 = vmatprep.mubr.f32.mxu0 0.0
    %v268 = vand.u32 %v39, 4294901760
    %v269 = vsub.f32 %v39, %v268
    %270 = vmatmul.mubr.f32.gmra.mrb[0].mxu0 %v269
    %v271 = vpop.f32.mrb[0].mxu0
    %v272 = vadd.f32 %v196, %v271
    %v273 = vpop.f32.mrb[0].mxu0
    %274 = vdwg.mxu0
    %275 = vmatprep.subr.mxu0 0.0
    %v276 = vand.u32 %v35, 4294901760
    %277 = vmatpush1.msra.mxu0 %v276
    %278 = vmatprep.subr.mxu0 0.0
    %v279 = vand.u32 %v36, 4294901760
    %280 = vmatpush1.msra.mxu0 %v279
    %281 = vmatprep.subr.mxu0 0.0
    %282 = vmatpush1.msra.mxu0 0.0
    %283 = vmatprep.subr.mxu0 0.0
    %284 = vmatpush1.msra.mxu0 0.0
    %285 = vmatprep.subr.mxu0 0.0
    %286 = vmatpush1.msra.mxu0 0.0
    %287 = vmatprep.subr.mxu0 0.0
    %288 = vmatpush1.msra.mxu0 0.0
    %289 = vmatprep.subr.mxu0 0.0
    %290 = vmatpush1.msra.mxu0 0.0
    %291 = vmatprep.subr.mxu0 0.0
    %292 = vmatpush1.msra.mxu0 0.0
    %293 = vmatprep.subr.mxu0 0.0
    %294 = vmatpush1.msra.mxu0 0.0
    %295 = vmatprep.subr.mxu0 0.0
    %296 = vmatpush1.msra.mxu0 0.0
    %297 = vmatprep.subr.mxu0 0.0
    %298 = vmatpush1.msra.mxu0 0.0
    %299 = vmatprep.subr.mxu0 0.0
    %300 = vmatpush1.msra.mxu0 0.0
    %301 = vmatprep.subr.mxu0 0.0
    %302 = vmatpush1.msra.mxu0 0.0
    %303 = vmatprep.subr.mxu0 0.0
    %304 = vmatpush1.msra.mxu0 0.0
    %305 = vmatprep.subr.mxu0 0.0
    %306 = vmatpush1.msra.mxu0 0.0
    %307 = vmatprep.subr.mxu0 0.0
    %308 = vmatpush1.msra.mxu0 0.0
    %309 = vmatprep.subr.mxu0 0.0
    %310 = vmatpush1.msra.mxu0 0.0
    %311 = vmatprep.subr.mxu0 0.0
    %312 = vmatpush1.msra.mxu0 0.0
    %313 = vmatprep.subr.mxu0 0.0
    %314 = vmatpush1.msra.mxu0 0.0
    %315 = vmatprep.subr.mxu0 0.0
    %316 = vmatpush1.msra.mxu0 0.0
    %317 = vmatprep.subr.mxu0 0.0
    %318 = vmatpush1.msra.mxu0 0.0
    %319 = vmatprep.subr.mxu0 0.0
    %320 = vmatpush1.msra.mxu0 0.0
    %321 = vmatprep.subr.mxu0 0.0
    %322 = vmatpush1.msra.mxu0 0.0
    %323 = vmatprep.subr.mxu0 0.0
    %324 = vmatpush1.msra.mxu0 0.0
    %325 = vmatprep.subr.mxu0 0.0
    %326 = vmatpush1.msra.mxu0 0.0
    %327 = vmatprep.subr.mxu0 0.0
    %328 = vmatpush1.msra.mxu0 0.0
    %329 = vmatprep.subr.mxu0 0.0
    %330 = vmatpush1.msra.mxu0 0.0
    %331 = vmatprep.subr.mxu0 0.0
    %332 = vmatpush1.msra.mxu0 0.0
    %333 = vmatprep.subr.mxu0 0.0
    %334 = vmatpush1.msra.mxu0 0.0
    %335 = vmatprep.subr.mxu0 0.0
    %336 = vmatpush1.msra.mxu0 0.0
    %337 = vmatprep.subr.mxu0 0.0
    %338 = vmatpush1.msra.mxu0 0.0
    %339 = vmatprep.subr.mxu0 0.0
    %340 = vmatpush1.msra.mxu0 0.0
    %341 = vmatprep.mubr.f32.mxu0 0.0
    %v342 = vand.u32 %v39, 4294901760
    %v343 = vsub.f32 %v39, %v342
    %v344 = vand.u32 %v343, 4294901760
    %345 = vmatmul.mubr.f32.gmra.mrb[0].mxu0 %v344
    %v346 = vpop.f32.mrb[0].mxu0
    %v347 = vadd.f32 %v272, %v346
    %v348 = vpop.f32.mrb[0].mxu0
    %349 = vdwg.mxu0
    %350 = vmatprep.subr.mxu0 0.0
    %v351 = vand.u32 %v35, 4294901760
    %v352 = vsub.f32 %v35, %v351
    %v353 = vand.u32 %v352, 4294901760
    %354 = vmatpush1.msra.mxu0 %v353
    %355 = vmatprep.subr.mxu0 0.0
    %v356 = vand.u32 %v36, 4294901760
    %v357 = vsub.f32 %v36, %v356
    %v358 = vand.u32 %v357, 4294901760
    %359 = vmatpush1.msra.mxu0 %v358
    %360 = vmatprep.subr.mxu0 0.0
    %361 = vmatpush1.msra.mxu0 0.0
    %362 = vmatprep.subr.mxu0 0.0
    %363 = vmatpush1.msra.mxu0 0.0
    %364 = vmatprep.subr.mxu0 0.0
    %365 = vmatpush1.msra.mxu0 0.0
    %366 = vmatprep.subr.mxu0 0.0
    %367 = vmatpush1.msra.mxu0 0.0
    %368 = vmatprep.subr.mxu0 0.0
    %369 = vmatpush1.msra.mxu0 0.0
    %370 = vmatprep.subr.mxu0 0.0
    %371 = vmatpush1.msra.mxu0 0.0
    %372 = vmatprep.subr.mxu0 0.0
    %373 = vmatpush1.msra.mxu0 0.0
    %374 = vmatprep.subr.mxu0 0.0
    %375 = vmatpush1.msra.mxu0 0.0
    %376 = vmatprep.subr.mxu0 0.0
    %377 = vmatpush1.msra.mxu0 0.0
    %378 = vmatprep.subr.mxu0 0.0
    %379 = vmatpush1.msra.mxu0 0.0
    %380 = vmatprep.subr.mxu0 0.0
    %381 = vmatpush1.msra.mxu0 0.0
    %382 = vmatprep.subr.mxu0 0.0
    %383 = vmatpush1.msra.mxu0 0.0
    %384 = vmatprep.subr.mxu0 0.0
    %385 = vmatpush1.msra.mxu0 0.0
    %386 = vmatprep.subr.mxu0 0.0
    %387 = vmatpush1.msra.mxu0 0.0
    %388 = vmatprep.subr.mxu0 0.0
    %389 = vmatpush1.msra.mxu0 0.0
    %390 = vmatprep.subr.mxu0 0.0
    %391 = vmatpush1.msra.mxu0 0.0
    %392 = vmatprep.subr.mxu0 0.0
    %393 = vmatpush1.msra.mxu0 0.0
    %394 = vmatprep.subr.mxu0 0.0
    %395 = vmatpush1.msra.mxu0 0.0
    %396 = vmatprep.subr.mxu0 0.0
    %397 = vmatpush1.msra.mxu0 0.0
    %398 = vmatprep.subr.mxu0 0.0
    %399 = vmatpush1.msra.mxu0 0.0
    %400 = vmatprep.subr.mxu0 0.0
    %401 = vmatpush1.msra.mxu0 0.0
    %402 = vmatprep.subr.mxu0 0.0
    %403 = vmatpush1.msra.mxu0 0.0
    %404 = vmatprep.subr.mxu0 0.0
    %405 = vmatpush1.msra.mxu0 0.0
    %406 = vmatprep.subr.mxu0 0.0
    %407 = vmatpush1.msra.mxu0 0.0
    %408 = vmatprep.subr.mxu0 0.0
    %409 = vmatpush1.msra.mxu0 0.0
    %410 = vmatprep.subr.mxu0 0.0
    %411 = vmatpush1.msra.mxu0 0.0
    %412 = vmatprep.subr.mxu0 0.0
    %413 = vmatpush1.msra.mxu0 0.0
    %414 = vmatprep.subr.mxu0 0.0
    %415 = vmatpush1.msra.mxu0 0.0
    %416 = vmatprep.subr.mxu0 0.0
    %417 = vmatpush1.msra.mxu0 0.0
    %418 = vmatprep.subr.mxu0 0.0
    %419 = vmatpush1.msra.mxu0 0.0
    %420 = vmatprep.mubr.f32.mxu0 0.0
    %v421 = vand.u32 %v39, 4294901760
    %422 = vmatmul.mubr.f32.gmra.mrb[0].mxu0 %v421
    %v423 = vpop.f32.mrb[0].mxu0
    %v424 = vadd.f32 %v347, %v423
    %v425 = vpop.f32.mrb[0].mxu0
    %426 = vdwg.mxu0
    %427 = vmatprep.subr.mxu0 0.0
    %v428 = vand.u32 %v35, 4294901760
    %429 = vmatpush1.msra.mxu0 %v428
    %430 = vmatprep.subr.mxu0 0.0
    %v431 = vand.u32 %v36, 4294901760
    %432 = vmatpush1.msra.mxu0 %v431
    %433 = vmatprep.subr.mxu0 0.0
    %434 = vmatpush1.msra.mxu0 0.0
    %435 = vmatprep.subr.mxu0 0.0
    %436 = vmatpush1.msra.mxu0 0.0
    %437 = vmatprep.subr.mxu0 0.0
    %438 = vmatpush1.msra.mxu0 0.0
    %439 = vmatprep.subr.mxu0 0.0
    %440 = vmatpush1.msra.mxu0 0.0
    %441 = vmatprep.subr.mxu0 0.0
    %442 = vmatpush1.msra.mxu0 0.0
    %443 = vmatprep.subr.mxu0 0.0
    %444 = vmatpush1.msra.mxu0 0.0
    %445 = vmatprep.subr.mxu0 0.0
    %446 = vmatpush1.msra.mxu0 0.0
    %447 = vmatprep.subr.mxu0 0.0
    %448 = vmatpush1.msra.mxu0 0.0
    %449 = vmatprep.subr.mxu0 0.0
    %450 = vmatpush1.msra.mxu0 0.0
    %451 = vmatprep.subr.mxu0 0.0
    %452 = vmatpush1.msra.mxu0 0.0
    %453 = vmatprep.subr.mxu0 0.0
    %454 = vmatpush1.msra.mxu0 0.0
    %455 = vmatprep.subr.mxu0 0.0
    %456 = vmatpush1.msra.mxu0 0.0
    %457 = vmatprep.subr.mxu0 0.0
    %458 = vmatpush1.msra.mxu0 0.0
    %459 = vmatprep.subr.mxu0 0.0
    %460 = vmatpush1.msra.mxu0 0.0
    %461 = vmatprep.subr.mxu0 0.0
    %462 = vmatpush1.msra.mxu0 0.0
    %463 = vmatprep.subr.mxu0 0.0
    %464 = vmatpush1.msra.mxu0 0.0
    %465 = vmatprep.subr.mxu0 0.0
    %466 = vmatpush1.msra.mxu0 0.0
    %467 = vmatprep.subr.mxu0 0.0
    %468 = vmatpush1.msra.mxu0 0.0
    %469 = vmatprep.subr.mxu0 0.0
    %470 = vmatpush1.msra.mxu0 0.0
    %471 = vmatprep.subr.mxu0 0.0
    %472 = vmatpush1.msra.mxu0 0.0
    %473 = vmatprep.subr.mxu0 0.0
    %474 = vmatpush1.msra.mxu0 0.0
    %475 = vmatprep.subr.mxu0 0.0
    %476 = vmatpush1.msra.mxu0 0.0
    %477 = vmatprep.subr.mxu0 0.0
    %478 = vmatpush1.msra.mxu0 0.0
    %479 = vmatprep.subr.mxu0 0.0
    %480 = vmatpush1.msra.mxu0 0.0
    %481 = vmatprep.subr.mxu0 0.0
    %482 = vmatpush1.msra.mxu0 0.0
    %483 = vmatprep.subr.mxu0 0.0
    %484 = vmatpush1.msra.mxu0 0.0
    %485 = vmatprep.subr.mxu0 0.0
    %486 = vmatpush1.msra.mxu0 0.0
    %487 = vmatprep.subr.mxu0 0.0
    %488 = vmatpush1.msra.mxu0 0.0
    %489 = vmatprep.subr.mxu0 0.0
    %490 = vmatpush1.msra.mxu0 0.0
    %491 = vmatprep.subr.mxu0 0.0
    %492 = vmatpush1.msra.mxu0 0.0
    %493 = vmatprep.mubr.f32.mxu0 0.0
    %v494 = vand.u32 %v39, 4294901760
    %495 = vmatmul.mubr.f32.gmra.mrb[0].mxu0 %v494
    %v496 = vpop.f32.mrb[0].mxu0
    %v497 = vadd.f32 %v424, %v496
    %v498 = vpop.f32.mrb[0].mxu0
    %499 = vdwg.mxu0
    %500 = vst [vmem:[#allocation5] sm:$0xff] %v497
    // Predicated region
    $region14: #{tpu_custom_call.1} parent=1 // pred_check
      _
    $region15: #{tpu_custom_call.1} parent=1 // pred_check_branch
      %502 = sbr.rel (0) target = $region17
    $region16: #{tpu_custom_call.1} parent=1 // pred_region
      %s504 = ssub.s32 128, 128
      %505 = vsyncadd [#allocation4], %s504
      %s507 = sshll.u32 [#allocation5], 4
      %s508 = int_to_ptr.vmem [resolvable:$true] %s507
      %510 = dma.vmem_to_hbm [thread:$0]  %s508, 128, %s2, [#allocation4]
    $region17: #{tpu_custom_call.1} parent=1 // pred_fallthru
      _
    // Predicated region
    $region18: #{tpu_custom_call.1} parent=1 // pred_check
      _
    $region19: #{tpu_custom_call.1} parent=1 // pred_check_branch
      %512 = sbr.rel (0) target = $region21
    $region20: #{tpu_custom_call.1} parent=1 // pred_region
      %513 = dma.done [#allocation4], 128
    $region21: #{tpu_custom_call.1} parent=1 // pred_fallthru
      _
    %514 = vsyncpa [#allocation3], 1
    %515 = vsyncpa [#allocation4], 1

</llo_original>
